<compile_context>
chip_gen: v7x
topology: tpu7x:2x2x1
jax: 0.10.0
libtpu: 0.0.40
codegen_flags: <defaults>
</compile_context>

<pallas_src>
import functools

import jax
import jax.numpy as jnp
from jax.experimental import pallas as pl
from jax.experimental.pallas import tpu as pltpu


def _round_up(x, m):
    return ((x + m - 1) // m) * m


def _value_loss_kernel(nvalid_ref, pred_ref, targ_ref, sums_ref, ext_ref, *,
                       num_tiles):
    """Per-tile partial reductions into per-core resident (., 8, 128) accumulators.

    sums_ref: (6, 8, 128) rows = [sum (p-t)^2, sum p, sum t, sum p^2, sum t^2, sum p*t]
    ext_ref : (4, 8, 128) rows = [min p, min t, max p, max t]
    """
    c = pl.program_id(0)                     # core (parallel) axis
    i = pl.program_id(1)                     # row-tile (reduction) axis
    g = c * pl.num_programs(1) + i           # global tile index
    tile_rows = pred_ref.shape[0]
    groups = tile_rows // 8

    @pl.when(i == 0)
    def _init():
        # Neutral init on every core (also covers cores that only see ghost steps).
        sums_ref[...] = jnp.zeros_like(sums_ref)
        ext_ref[0] = jnp.full((8, 128), jnp.inf, jnp.float32)
        ext_ref[1] = jnp.full((8, 128), jnp.inf, jnp.float32)
        ext_ref[2] = jnp.full((8, 128), -jnp.inf, jnp.float32)
        ext_ref[3] = jnp.full((8, 128), -jnp.inf, jnp.float32)

    def load():
        return (pred_ref[...].astype(jnp.float32),
                targ_ref[...].astype(jnp.float32))

    # Reduce a (tile_rows, 128) tile to a full-vreg (8, 128) partial: a pure
    # VALU vreg-wise reduction (no cross-sublane shuffle, no masked stores).
    def fold(x, op):
        return op(x.reshape(groups, 8, 128), axis=0)

    def accumulate(p0, t0, p_min, t_min, p_max, t_max):
        d = p0 - t0
        sums_ref[0] = sums_ref[0] + fold(d * d, jnp.sum)
        sums_ref[1] = sums_ref[1] + fold(p0, jnp.sum)
        sums_ref[2] = sums_ref[2] + fold(t0, jnp.sum)
        sums_ref[3] = sums_ref[3] + fold(p0 * p0, jnp.sum)
        sums_ref[4] = sums_ref[4] + fold(t0 * t0, jnp.sum)
        sums_ref[5] = sums_ref[5] + fold(p0 * t0, jnp.sum)
        ext_ref[0] = jnp.minimum(ext_ref[0], fold(p_min, jnp.min))
        ext_ref[1] = jnp.minimum(ext_ref[1], fold(t_min, jnp.min))
        ext_ref[2] = jnp.maximum(ext_ref[2], fold(p_max, jnp.max))
        ext_ref[3] = jnp.maximum(ext_ref[3], fold(t_max, jnp.max))

    # Interior tiles: fully valid, no mask / no selects.
    @pl.when(g < num_tiles - 1)
    def _bulk():
        p, t = load()
        accumulate(p, t, p, t, p, t)

    # Last tile only: mask the padded / out-of-bounds tail.
    @pl.when(g == num_tiles - 1)
    def _last():
        p, t = load()
        n_valid = nvalid_ref[0]
        # NOTE: int32 element index; fine for B < 2^31 (value-loss batches).
        base = g * (tile_rows * 128)
        idx = (base
               + jax.lax.broadcasted_iota(jnp.int32, (tile_rows, 128), 0) * 128
               + jax.lax.broadcasted_iota(jnp.int32, (tile_rows, 128), 1))
        valid = idx < n_valid
        accumulate(jnp.where(valid, p, 0.0), jnp.where(valid, t, 0.0),
                   jnp.where(valid, p, jnp.inf), jnp.where(valid, t, jnp.inf),
                   jnp.where(valid, p, -jnp.inf), jnp.where(valid, t, -jnp.inf))
    # Ghost steps (g >= num_tiles) skip both branches and keep the neutral init.


def value_loss(pred, targ, *, max_tile_rows=8192, num_cores=2):
    """pred, targ: (B, 1) (or (B,)) float arrays. Returns (loss, info) like ValueLoss.forward."""
    assert pred.shape == targ.shape
    assert pred.ndim == 1 or (pred.ndim == 2 and pred.shape[1] == 1)
    B = pred.shape[0]
    lane = 128

    # Stream bf16 inputs as bf16 (halves HBM bytes for a bandwidth-bound kernel);
    # everything else as f32. Math inside the kernel is always f32.
    stream_dtype = jnp.bfloat16 if pred.dtype == jnp.bfloat16 else jnp.float32
    sub = 8 if stream_dtype == jnp.float32 else 16      # sublane packing of the dtype
    itemsize = 4 if stream_dtype == jnp.float32 else 2

    rows_needed = pl.cdiv(B, lane)
    rows = _round_up(rows_needed, sub)                   # array rows (sublane-aligned)
    padded = rows * lane

    def to_dense(x):
        flat = x.reshape(-1)
        if flat.dtype != stream_dtype:
            flat = flat.astype(stream_dtype)
        if padded == B:
            return flat.reshape(rows, lane)              # free bitcast: zero-copy path
        # Ragged batch: one minimal pad (< sub*lane padding elements). Only this
        # path copies the inputs; aligned (power-of-two) batches pay nothing.
        return jnp.pad(flat, (0, padded - B)).reshape(rows, lane)

    p2 = to_dense(pred)
    t2 = to_dense(targ)

    max_tile_rows = max(sub, (int(max_tile_rows) // sub) * sub)
    tile_rows = min(max_tile_rows, rows)
    num_tiles = pl.cdiv(rows, tile_rows)                 # last tile may be partial (masked)
    tiles_per_core = pl.cdiv(num_tiles, num_cores)

    kernel = functools.partial(_value_loss_kernel, num_tiles=num_tiles)

    block_bytes = tile_rows * lane * itemsize
    vmem_limit = int(min(max(6 * block_bytes + (2 << 20), 32 << 20), 64 << 20))

    n_valid = jnp.array([B], dtype=jnp.int32)

    def in_map(c, i, nv):
        # Clamp ghost steps (per-core round-up) onto a valid block; the kernel
        # skips their compute.
        return (jnp.minimum(c * tiles_per_core + i, num_tiles - 1), 0)

    raw_sums, raw_ext = pl.pallas_call(
        kernel,
        out_shape=(
            jax.ShapeDtypeStruct((num_cores, 6, 8, lane), jnp.float32),
            jax.ShapeDtypeStruct((num_cores, 4, 8, lane), jnp.float32),
        ),
        grid_spec=pltpu.PrefetchScalarGridSpec(
            num_scalar_prefetch=1,
            grid=(num_cores, tiles_per_core),
            in_specs=[
                pl.BlockSpec((tile_rows, lane), in_map),
                pl.BlockSpec((tile_rows, lane), in_map),
            ],
            out_specs=(
                pl.BlockSpec((None, 6, 8, lane), lambda c, i, nv: (c, 0, 0, 0)),
                pl.BlockSpec((None, 4, 8, lane), lambda c, i, nv: (c, 0, 0, 0)),
            ),
        ),
        compiler_params=pltpu.CompilerParams(
            dimension_semantics=("parallel", "arbitrary"),
            vmem_limit_bytes=vmem_limit,
        ),
        cost_estimate=pl.CostEstimate(
            flops=14 * padded,
            transcendentals=0,
            bytes_accessed=2 * padded * itemsize + num_cores * 10 * 8 * lane * 4,
        ),
    )(n_valid, p2, t2)

    # O(1) finalization in plain JAX (tiny cross-lane/core reduce + scalar math).
    s_dd, s_p, s_t, s_pp, s_tt, s_pt = jnp.sum(raw_sums, axis=(0, 2, 3))
    min_p, min_t = jnp.min(raw_ext[:, 0:2], axis=(0, 2, 3))
    max_p, max_t = jnp.max(raw_ext[:, 2:4], axis=(0, 2, 3))

    inv_n = jnp.float32(1.0 / B)                 # static (shape-derived) reciprocal
    loss = s_dd * inv_n                          # diff-based loss kept for numerics
    mean_p = s_p * inv_n
    mean_t = s_t * inv_n

    if B > 1:                                    # static branch, mirrors `len(pred) > 1`
        cov = s_pt - s_p * s_t * inv_n
        var_p = jnp.maximum(s_pp - s_p * s_p * inv_n, 0.0)
        var_t = jnp.maximum(s_tt - s_t * s_t * inv_n, 0.0)
        denom = jnp.sqrt(var_p * var_t)
        corr = jnp.where(denom > 0, cov / denom, jnp.float32(jnp.nan))
    else:
        corr = jnp.float32(jnp.nan)

    info = {
        "mean_pred": mean_p,
        "mean_targ": mean_t,
        "min_pred": min_p,
        "min_targ": min_t,
        "max_pred": max_p,
        "max_targ": max_t,
        "corr": corr,
    }
    return loss, info


def _reference(pred, targ):
    """Pure-JAX reference for correctness checking."""
    loss = jnp.mean((pred - targ) ** 2)
    if pred.shape[0] > 1:
        p = pred.squeeze()
        t = targ.squeeze()
        pc = p - p.mean()
        tc = t - t.mean()
        corr = jnp.sum(pc * tc) / jnp.sqrt(jnp.sum(pc * pc) * jnp.sum(tc * tc))
    else:
        corr = jnp.float32(jnp.nan)
    info = {
        "mean_pred": pred.mean(), "mean_targ": targ.mean(),
        "min_pred": pred.min(), "min_targ": targ.min(),
        "max_pred": pred.max(), "max_targ": targ.max(),
        "corr": corr,
    }
    return loss, info


if __name__ == "__main__":
    base_key = jax.random.PRNGKey(0)

    def check(B, **kw):
        kp, kt = jax.random.split(jax.random.fold_in(base_key, B))
        pred = jax.random.normal(kp, (B, 1), dtype=jnp.float32)
        targ = 0.5 * pred + jax.random.normal(kt, (B, 1), dtype=jnp.float32)

        loss, info = value_loss(pred, targ, **kw)
        jax.block_until_ready(loss)
        for v in info.values():
            jax.block_until_ready(jnp.asarray(v))

        ref_loss, ref_info = _reference(pred, targ)
        assert jnp.allclose(loss, ref_loss, rtol=1e-4, atol=1e-5), (B, loss, ref_loss)
        for k in ref_info:
            assert jnp.allclose(info[k], ref_info[k], rtol=1e-4, atol=1e-5,
                                equal_nan=True), (B, k, info[k], ref_info[k])

    check(8)                          # tiny batch (module-sized), single masked tile
    check(1)                          # corr == NaN path (len(pred) == 1)
    check(300)                        # ragged tail, minimal-pad path
    check(3000, max_tile_rows=8)      # multi-tile accumulation, ragged last tile
    check(4096, max_tile_rows=8)      # zero-copy aligned path, both cores do real work
    check(2048)                       # zero-copy aligned path, single large tile

    print("KERNEL_OK")
</pallas_src>

<mosaic_0001>
module attributes {stable_mosaic.version = 11 : i64} {
  func.func @_value_loss_kernel(%arg0: i32, %arg1: i32, %arg2: memref<1xi32, #tpu.memory_space<smem>>, %arg3: memref<8x128xf32, #tpu.memory_space<vmem>>, %arg4: memref<8x128xf32, #tpu.memory_space<vmem>>, %arg5: memref<1x6x8x128xf32, #tpu.memory_space<vmem>>, %arg6: memref<1x4x8x128xf32, #tpu.memory_space<vmem>>) attributes {dimension_semantics = [#tpu.dimension_semantics<parallel>, #tpu.dimension_semantics<arbitrary>], iteration_bounds = array<i64: 2, 1>, scalar_prefetch = 1 : i64, scratch_operands = 0 : i64, tpu.core_type = #tpu.core_type<tc>, window_params = [{transform_indices = @transform_0, window_bounds = array<i64: 8, 128>}, {transform_indices = @transform_1, window_bounds = array<i64: 8, 128>}, {transform_indices = @transform_2, window_bounds = array<i64: 1, 6, 8, 128>}, {transform_indices = @transform_3, window_bounds = array<i64: 1, 4, 8, 128>}]} {
    %c1_i32 = arith.constant 1 : i32
    %0 = arith.muli %arg0, %c1_i32 : i32
    %1 = arith.addi %0, %arg1 : i32
    %c0_i32 = arith.constant 0 : i32
    %2 = arith.cmpi eq, %arg1, %c0_i32 : i32
    %3 = arith.extui %2 : i1 to i32
    %c0_i32_0 = arith.constant 0 : i32
    %4 = arith.cmpi ne, %3, %c0_i32_0 : i32
    scf.if %4 {
      %cst = arith.constant 0.000000e+00 : f32
      %11 = vector.broadcast %cst : f32 to vector<6x8x128xf32>
      %c0 = arith.constant 0 : index
      %c0_5 = arith.constant 0 : index
      %c0_6 = arith.constant 0 : index
      %c0_7 = arith.constant 0 : index
      %12 = vector.load %arg5[%c0, %c0_5, %c0_6, %c0_7] : memref<1x6x8x128xf32, #tpu.memory_space<vmem>>, vector<1x6x8x128xf32>
      %13 = vector.shape_cast %12 : vector<1x6x8x128xf32> to vector<6x8x128xf32>
      %14 = vector.shape_cast %11 : vector<6x8x128xf32> to vector<1x6x8x128xf32>
      tpu.vector_store %arg5[%c0, %c0_5, %c0_6, %c0_7], %14 {strides = array<i32>} : memref<1x6x8x128xf32, #tpu.memory_space<vmem>>, vector<1x6x8x128xf32>,
      %cst_8 = arith.constant 0x7F800000 : f32
      %15 = vector.broadcast %cst_8 : f32 to vector<8x128xf32>
      %c0_9 = arith.constant 0 : index
      %c0_10 = arith.constant 0 : index
      %c0_11 = arith.constant 0 : index
      %c0_12 = arith.constant 0 : index
      %16 = vector.load %arg6[%c0_9, %c0_10, %c0_11, %c0_12] : memref<1x4x8x128xf32, #tpu.memory_space<vmem>>, vector<1x1x8x128xf32>
      %17 = vector.shape_cast %16 : vector<1x1x8x128xf32> to vector<8x128xf32>
      %18 = vector.shape_cast %15 : vector<8x128xf32> to vector<1x1x8x128xf32>
      tpu.vector_store %arg6[%c0_9, %c0_10, %c0_11, %c0_12], %18 {strides = array<i32>} : memref<1x4x8x128xf32, #tpu.memory_space<vmem>>, vector<1x1x8x128xf32>,
      %cst_13 = arith.constant 0x7F800000 : f32
      %19 = vector.broadcast %cst_13 : f32 to vector<8x128xf32>
      %c0_14 = arith.constant 0 : index
      %c1 = arith.constant 1 : index
      %c0_15 = arith.constant 0 : index
      %c0_16 = arith.constant 0 : index
      %20 = vector.load %arg6[%c0_14, %c1, %c0_15, %c0_16] : memref<1x4x8x128xf32, #tpu.memory_space<vmem>>, vector<1x1x8x128xf32>
      %21 = vector.shape_cast %20 : vector<1x1x8x128xf32> to vector<8x128xf32>
      %22 = vector.shape_cast %19 : vector<8x128xf32> to vector<1x1x8x128xf32>
      tpu.vector_store %arg6[%c0_14, %c1, %c0_15, %c0_16], %22 {strides = array<i32>} : memref<1x4x8x128xf32, #tpu.memory_space<vmem>>, vector<1x1x8x128xf32>,
      %cst_17 = arith.constant 0xFF800000 : f32
      %23 = vector.broadcast %cst_17 : f32 to vector<8x128xf32>
      %c0_18 = arith.constant 0 : index
      %c2 = arith.constant 2 : index
      %c0_19 = arith.constant 0 : index
      %c0_20 = arith.constant 0 : index
      %24 = vector.load %arg6[%c0_18, %c2, %c0_19, %c0_20] : memref<1x4x8x128xf32, #tpu.memory_space<vmem>>, vector<1x1x8x128xf32>
      %25 = vector.shape_cast %24 : vector<1x1x8x128xf32> to vector<8x128xf32>
      %26 = vector.shape_cast %23 : vector<8x128xf32> to vector<1x1x8x128xf32>
      tpu.vector_store %arg6[%c0_18, %c2, %c0_19, %c0_20], %26 {strides = array<i32>} : memref<1x4x8x128xf32, #tpu.memory_space<vmem>>, vector<1x1x8x128xf32>,
      %cst_21 = arith.constant 0xFF800000 : f32
      %27 = vector.broadcast %cst_21 : f32 to vector<8x128xf32>
      %c0_22 = arith.constant 0 : index
      %c3 = arith.constant 3 : index
      %c0_23 = arith.constant 0 : index
      %c0_24 = arith.constant 0 : index
      %28 = vector.load %arg6[%c0_22, %c3, %c0_23, %c0_24] : memref<1x4x8x128xf32, #tpu.memory_space<vmem>>, vector<1x1x8x128xf32>
      %29 = vector.shape_cast %28 : vector<1x1x8x128xf32> to vector<8x128xf32>
      %30 = vector.shape_cast %27 : vector<8x128xf32> to vector<1x1x8x128xf32>
      tpu.vector_store %arg6[%c0_22, %c3, %c0_23, %c0_24], %30 {strides = array<i32>} : memref<1x4x8x128xf32, #tpu.memory_space<vmem>>, vector<1x1x8x128xf32>,
    } else {
    }
    %c0_i32_1 = arith.constant 0 : i32
    %5 = arith.cmpi slt, %1, %c0_i32_1 : i32
    %6 = arith.extui %5 : i1 to i32
    %c0_i32_2 = arith.constant 0 : i32
    %7 = arith.cmpi ne, %6, %c0_i32_2 : i32
    scf.if %7 {
      %c0 = arith.constant 0 : index
      %c0_5 = arith.constant 0 : index
      %11 = vector.load %arg3[%c0, %c0_5] : memref<8x128xf32, #tpu.memory_space<vmem>>, vector<8x128xf32>
      %c0_6 = arith.constant 0 : index
      %c0_7 = arith.constant 0 : index
      %12 = vector.load %arg4[%c0_6, %c0_7] : memref<8x128xf32, #tpu.memory_space<vmem>>, vector<8x128xf32>
      %13 = arith.subf %11, %12 : vector<8x128xf32>
      %c0_8 = arith.constant 0 : index
      %c0_9 = arith.constant 0 : index
      %c0_10 = arith.constant 0 : index
      %c0_11 = arith.constant 0 : index
      %14 = vector.load %arg5[%c0_8, %c0_9, %c0_10, %c0_11] : memref<1x6x8x128xf32, #tpu.memory_space<vmem>>, vector<1x1x8x128xf32>
      %15 = vector.shape_cast %14 : vector<1x1x8x128xf32> to vector<8x128xf32>
      %16 = arith.mulf %13, %13 : vector<8x128xf32>
      %17 = vector.shape_cast %16 : vector<8x128xf32> to vector<1x8x128xf32>
      %cst = arith.constant dense<0.000000e+00> : vector<8x128xf32>
      %18 = vector.multi_reduction <add>, %17, %cst [0] : vector<1x8x128xf32> to vector<8x128xf32>
      %19 = arith.addf %15, %18 : vector<8x128xf32>
      %c0_12 = arith.constant 0 : index
      %c0_13 = arith.constant 0 : index
      %c0_14 = arith.constant 0 : index
      %c0_15 = arith.constant 0 : index
      %20 = vector.load %arg5[%c0_12, %c0_13, %c0_14, %c0_15] : memref<1x6x8x128xf32, #tpu.memory_space<vmem>>, vector<1x1x8x128xf32>
      %21 = vector.shape_cast %20 : vector<1x1x8x128xf32> to vector<8x128xf32>
      %22 = vector.shape_cast %19 : vector<8x128xf32> to vector<1x1x8x128xf32>
      tpu.vector_store %arg5[%c0_12, %c0_13, %c0_14, %c0_15], %22 {strides = array<i32>} : memref<1x6x8x128xf32, #tpu.memory_space<vmem>>, vector<1x1x8x128xf32>,
      %c0_16 = arith.constant 0 : index
      %c1 = arith.constant 1 : index
      %c0_17 = arith.constant 0 : index
      %c0_18 = arith.constant 0 : index
      %23 = vector.load %arg5[%c0_16, %c1, %c0_17, %c0_18] : memref<1x6x8x128xf32, #tpu.memory_space<vmem>>, vector<1x1x8x128xf32>
      %24 = vector.shape_cast %23 : vector<1x1x8x128xf32> to vector<8x128xf32>
      %25 = vector.shape_cast %11 : vector<8x128xf32> to vector<1x8x128xf32>
      %cst_19 = arith.constant dense<0.000000e+00> : vector<8x128xf32>
      %26 = vector.multi_reduction <add>, %25, %cst_19 [0] : vector<1x8x128xf32> to vector<8x128xf32>
      %27 = arith.addf %24, %26 : vector<8x128xf32>
      %c0_20 = arith.constant 0 : index
      %c1_21 = arith.constant 1 : index
      %c0_22 = arith.constant 0 : index
      %c0_23 = arith.constant 0 : index
      %28 = vector.load %arg5[%c0_20, %c1_21, %c0_22, %c0_23] : memref<1x6x8x128xf32, #tpu.memory_space<vmem>>, vector<1x1x8x128xf32>
      %29 = vector.shape_cast %28 : vector<1x1x8x128xf32> to vector<8x128xf32>
      %30 = vector.shape_cast %27 : vector<8x128xf32> to vector<1x1x8x128xf32>
      tpu.vector_store %arg5[%c0_20, %c1_21, %c0_22, %c0_23], %30 {strides = array<i32>} : memref<1x6x8x128xf32, #tpu.memory_space<vmem>>, vector<1x1x8x128xf32>,
      %c0_24 = arith.constant 0 : index
      %c2 = arith.constant 2 : index
      %c0_25 = arith.constant 0 : index
      %c0_26 = arith.constant 0 : index
      %31 = vector.load %arg5[%c0_24, %c2, %c0_25, %c0_26] : memref<1x6x8x128xf32, #tpu.memory_space<vmem>>, vector<1x1x8x128xf32>
      %32 = vector.shape_cast %31 : vector<1x1x8x128xf32> to vector<8x128xf32>
      %33 = vector.shape_cast %12 : vector<8x128xf32> to vector<1x8x128xf32>
      %cst_27 = arith.constant dense<0.000000e+00> : vector<8x128xf32>
      %34 = vector.multi_reduction <add>, %33, %cst_27 [0] : vector<1x8x128xf32> to vector<8x128xf32>
      %35 = arith.addf %32, %34 : vector<8x128xf32>
      %c0_28 = arith.constant 0 : index
      %c2_29 = arith.constant 2 : index
      %c0_30 = arith.constant 0 : index
      %c0_31 = arith.constant 0 : index
      %36 = vector.load %arg5[%c0_28, %c2_29, %c0_30, %c0_31] : memref<1x6x8x128xf32, #tpu.memory_space<vmem>>, vector<1x1x8x128xf32>
      %37 = vector.shape_cast %36 : vector<1x1x8x128xf32> to vector<8x128xf32>
      %38 = vector.shape_cast %35 : vector<8x128xf32> to vector<1x1x8x128xf32>
      tpu.vector_store %arg5[%c0_28, %c2_29, %c0_30, %c0_31], %38 {strides = array<i32>} : memref<1x6x8x128xf32, #tpu.memory_space<vmem>>, vector<1x1x8x128xf32>,
      %c0_32 = arith.constant 0 : index
      %c3 = arith.constant 3 : index
      %c0_33 = arith.constant 0 : index
      %c0_34 = arith.constant 0 : index
      %39 = vector.load %arg5[%c0_32, %c3, %c0_33, %c0_34] : memref<1x6x8x128xf32, #tpu.memory_space<vmem>>, vector<1x1x8x128xf32>
      %40 = vector.shape_cast %39 : vector<1x1x8x128xf32> to vector<8x128xf32>
      %41 = arith.mulf %11, %11 : vector<8x128xf32>
      %42 = vector.shape_cast %41 : vector<8x128xf32> to vector<1x8x128xf32>
      %cst_35 = arith.constant dense<0.000000e+00> : vector<8x128xf32>
      %43 = vector.multi_reduction <add>, %42, %cst_35 [0] : vector<1x8x128xf32> to vector<8x128xf32>
      %44 = arith.addf %40, %43 : vector<8x128xf32>
      %c0_36 = arith.constant 0 : index
      %c3_37 = arith.constant 3 : index
      %c0_38 = arith.constant 0 : index
      %c0_39 = arith.constant 0 : index
      %45 = vector.load %arg5[%c0_36, %c3_37, %c0_38, %c0_39] : memref<1x6x8x128xf32, #tpu.memory_space<vmem>>, vector<1x1x8x128xf32>
      %46 = vector.shape_cast %45 : vector<1x1x8x128xf32> to vector<8x128xf32>
      %47 = vector.shape_cast %44 : vector<8x128xf32> to vector<1x1x8x128xf32>
      tpu.vector_store %arg5[%c0_36, %c3_37, %c0_38, %c0_39], %47 {strides = array<i32>} : memref<1x6x8x128xf32, #tpu.memory_space<vmem>>, vector<1x1x8x128xf32>,
      %c0_40 = arith.constant 0 : index
      %c4 = arith.constant 4 : index
      %c0_41 = arith.constant 0 : index
      %c0_42 = arith.constant 0 : index
      %48 = vector.load %arg5[%c0_40, %c4, %c0_41, %c0_42] : memref<1x6x8x128xf32, #tpu.memory_space<vmem>>, vector<1x1x8x128xf32>
      %49 = vector.shape_cast %48 : vector<1x1x8x128xf32> to vector<8x128xf32>
      %50 = arith.mulf %12, %12 : vector<8x128xf32>
      %51 = vector.shape_cast %50 : vector<8x128xf32> to vector<1x8x128xf32>
      %cst_43 = arith.constant dense<0.000000e+00> : vector<8x128xf32>
      %52 = vector.multi_reduction <add>, %51, %cst_43 [0] : vector<1x8x128xf32> to vector<8x128xf32>
      %53 = arith.addf %49, %52 : vector<8x128xf32>
      %c0_44 = arith.constant 0 : index
      %c4_45 = arith.constant 4 : index
      %c0_46 = arith.constant 0 : index
      %c0_47 = arith.constant 0 : index
      %54 = vector.load %arg5[%c0_44, %c4_45, %c0_46, %c0_47] : memref<1x6x8x128xf32, #tpu.memory_space<vmem>>, vector<1x1x8x128xf32>
      %55 = vector.shape_cast %54 : vector<1x1x8x128xf32> to vector<8x128xf32>
      %56 = vector.shape_cast %53 : vector<8x128xf32> to vector<1x1x8x128xf32>
      tpu.vector_store %arg5[%c0_44, %c4_45, %c0_46, %c0_47], %56 {strides = array<i32>} : memref<1x6x8x128xf32, #tpu.memory_space<vmem>>, vector<1x1x8x128xf32>,
      %c0_48 = arith.constant 0 : index
      %c5 = arith.constant 5 : index
      %c0_49 = arith.constant 0 : index
      %c0_50 = arith.constant 0 : index
      %57 = vector.load %arg5[%c0_48, %c5, %c0_49, %c0_50] : memref<1x6x8x128xf32, #tpu.memory_space<vmem>>, vector<1x1x8x128xf32>
      %58 = vector.shape_cast %57 : vector<1x1x8x128xf32> to vector<8x128xf32>
      %59 = arith.mulf %11, %12 : vector<8x128xf32>
      %60 = vector.shape_cast %59 : vector<8x128xf32> to vector<1x8x128xf32>
      %cst_51 = arith.constant dense<0.000000e+00> : vector<8x128xf32>
      %61 = vector.multi_reduction <add>, %60, %cst_51 [0] : vector<1x8x128xf32> to vector<8x128xf32>
      %62 = arith.addf %58, %61 : vector<8x128xf32>
      %c0_52 = arith.constant 0 : index
      %c5_53 = arith.constant 5 : index
      %c0_54 = arith.constant 0 : index
      %c0_55 = arith.constant 0 : index
      %63 = vector.load %arg5[%c0_52, %c5_53, %c0_54, %c0_55] : memref<1x6x8x128xf32, #tpu.memory_space<vmem>>, vector<1x1x8x128xf32>
      %64 = vector.shape_cast %63 : vector<1x1x8x128xf32> to vector<8x128xf32>
      %65 = vector.shape_cast %62 : vector<8x128xf32> to vector<1x1x8x128xf32>
      tpu.vector_store %arg5[%c0_52, %c5_53, %c0_54, %c0_55], %65 {strides = array<i32>} : memref<1x6x8x128xf32, #tpu.memory_space<vmem>>, vector<1x1x8x128xf32>,
      %c0_56 = arith.constant 0 : index
      %c0_57 = arith.constant 0 : index
      %c0_58 = arith.constant 0 : index
      %c0_59 = arith.constant 0 : index
      %66 = vector.load %arg6[%c0_56, %c0_57, %c0_58, %c0_59] : memref<1x4x8x128xf32, #tpu.memory_space<vmem>>, vector<1x1x8x128xf32>
      %67 = vector.shape_cast %66 : vector<1x1x8x128xf32> to vector<8x128xf32>
      %68 = vector.shape_cast %11 : vector<8x128xf32> to vector<1x8x128xf32>
      %cst_60 = arith.constant dense<0x7F800000> : vector<8x128xf32>
      %69 = vector.multi_reduction <minimumf>, %68, %cst_60 [0] : vector<1x8x128xf32> to vector<8x128xf32>
      %70 = arith.minimumf %67, %69 : vector<8x128xf32>
      %c0_61 = arith.constant 0 : index
      %c0_62 = arith.constant 0 : index
      %c0_63 = arith.constant 0 : index
      %c0_64 = arith.constant 0 : index
      %71 = vector.load %arg6[%c0_61, %c0_62, %c0_63, %c0_64] : memref<1x4x8x128xf32, #tpu.memory_space<vmem>>, vector<1x1x8x128xf32>
      %72 = vector.shape_cast %71 : vector<1x1x8x128xf32> to vector<8x128xf32>
      %73 = vector.shape_cast %70 : vector<8x128xf32> to vector<1x1x8x128xf32>
      tpu.vector_store %arg6[%c0_61, %c0_62, %c0_63, %c0_64], %73 {strides = array<i32>} : memref<1x4x8x128xf32, #tpu.memory_space<vmem>>, vector<1x1x8x128xf32>,
      %c0_65 = arith.constant 0 : index
      %c1_66 = arith.constant 1 : index
      %c0_67 = arith.constant 0 : index
      %c0_68 = arith.constant 0 : index
      %74 = vector.load %arg6[%c0_65, %c1_66, %c0_67, %c0_68] : memref<1x4x8x128xf32, #tpu.memory_space<vmem>>, vector<1x1x8x128xf32>
      %75 = vector.shape_cast %74 : vector<1x1x8x128xf32> to vector<8x128xf32>
      %76 = vector.shape_cast %12 : vector<8x128xf32> to vector<1x8x128xf32>
      %cst_69 = arith.constant dense<0x7F800000> : vector<8x128xf32>
      %77 = vector.multi_reduction <minimumf>, %76, %cst_69 [0] : vector<1x8x128xf32> to vector<8x128xf32>
      %78 = arith.minimumf %75, %77 : vector<8x128xf32>
      %c0_70 = arith.constant 0 : index
      %c1_71 = arith.constant 1 : index
      %c0_72 = arith.constant 0 : index
      %c0_73 = arith.constant 0 : index
      %79 = vector.load %arg6[%c0_70, %c1_71, %c0_72, %c0_73] : memref<1x4x8x128xf32, #tpu.memory_space<vmem>>, vector<1x1x8x128xf32>
      %80 = vector.shape_cast %79 : vector<1x1x8x128xf32> to vector<8x128xf32>
      %81 = vector.shape_cast %78 : vector<8x128xf32> to vector<1x1x8x128xf32>
      tpu.vector_store %arg6[%c0_70, %c1_71, %c0_72, %c0_73], %81 {strides = array<i32>} : memref<1x4x8x128xf32, #tpu.memory_space<vmem>>, vector<1x1x8x128xf32>,
      %c0_74 = arith.constant 0 : index
      %c2_75 = arith.constant 2 : index
      %c0_76 = arith.constant 0 : index
      %c0_77 = arith.constant 0 : index
      %82 = vector.load %arg6[%c0_74, %c2_75, %c0_76, %c0_77] : memref<1x4x8x128xf32, #tpu.memory_space<vmem>>, vector<1x1x8x128xf32>
      %83 = vector.shape_cast %82 : vector<1x1x8x128xf32> to vector<8x128xf32>
      %84 = vector.shape_cast %11 : vector<8x128xf32> to vector<1x8x128xf32>
      %cst_78 = arith.constant dense<0xFF800000> : vector<8x128xf32>
      %85 = vector.multi_reduction <maximumf>, %84, %cst_78 [0] : vector<1x8x128xf32> to vector<8x128xf32>
      %86 = arith.maximumf %83, %85 : vector<8x128xf32>
      %c0_79 = arith.constant 0 : index
      %c2_80 = arith.constant 2 : index
      %c0_81 = arith.constant 0 : index
      %c0_82 = arith.constant 0 : index
      %87 = vector.load %arg6[%c0_79, %c2_80, %c0_81, %c0_82] : memref<1x4x8x128xf32, #tpu.memory_space<vmem>>, vector<1x1x8x128xf32>
      %88 = vector.shape_cast %87 : vector<1x1x8x128xf32> to vector<8x128xf32>
      %89 = vector.shape_cast %86 : vector<8x128xf32> to vector<1x1x8x128xf32>
      tpu.vector_store %arg6[%c0_79, %c2_80, %c0_81, %c0_82], %89 {strides = array<i32>} : memref<1x4x8x128xf32, #tpu.memory_space<vmem>>, vector<1x1x8x128xf32>,
      %c0_83 = arith.constant 0 : index
      %c3_84 = arith.constant 3 : index
      %c0_85 = arith.constant 0 : index
      %c0_86 = arith.constant 0 : index
      %90 = vector.load %arg6[%c0_83, %c3_84, %c0_85, %c0_86] : memref<1x4x8x128xf32, #tpu.memory_space<vmem>>, vector<1x1x8x128xf32>
      %91 = vector.shape_cast %90 : vector<1x1x8x128xf32> to vector<8x128xf32>
      %92 = vector.shape_cast %12 : vector<8x128xf32> to vector<1x8x128xf32>
      %cst_87 = arith.constant dense<0xFF800000> : vector<8x128xf32>
      %93 = vector.multi_reduction <maximumf>, %92, %cst_87 [0] : vector<1x8x128xf32> to vector<8x128xf32>
      %94 = arith.maximumf %91, %93 : vector<8x128xf32>
      %c0_88 = arith.constant 0 : index
      %c3_89 = arith.constant 3 : index
      %c0_90 = arith.constant 0 : index
      %c0_91 = arith.constant 0 : index
      %95 = vector.load %arg6[%c0_88, %c3_89, %c0_90, %c0_91] : memref<1x4x8x128xf32, #tpu.memory_space<vmem>>, vector<1x1x8x128xf32>
      %96 = vector.shape_cast %95 : vector<1x1x8x128xf32> to vector<8x128xf32>
      %97 = vector.shape_cast %94 : vector<8x128xf32> to vector<1x1x8x128xf32>
      tpu.vector_store %arg6[%c0_88, %c3_89, %c0_90, %c0_91], %97 {strides = array<i32>} : memref<1x4x8x128xf32, #tpu.memory_space<vmem>>, vector<1x1x8x128xf32>,
    } else {
    }
    %c0_i32_3 = arith.constant 0 : i32
    %8 = arith.cmpi eq, %1, %c0_i32_3 : i32
    %9 = arith.extui %8 : i1 to i32
    %c0_i32_4 = arith.constant 0 : i32
    %10 = arith.cmpi ne, %9, %c0_i32_4 : i32
    scf.if %10 {
      %c0 = arith.constant 0 : index
      %c0_5 = arith.constant 0 : index
      %11 = vector.load %arg3[%c0, %c0_5] : memref<8x128xf32, #tpu.memory_space<vmem>>, vector<8x128xf32>
      %c0_6 = arith.constant 0 : index
      %c0_7 = arith.constant 0 : index
      %12 = vector.load %arg4[%c0_6, %c0_7] : memref<8x128xf32, #tpu.memory_space<vmem>>, vector<8x128xf32>
      %c0_8 = arith.constant 0 : index
      %13 = memref.load %arg2[%c0_8] : memref<1xi32, #tpu.memory_space<smem>>
      %c1024_i32 = arith.constant 1024 : i32
      %14 = arith.muli %1, %c1024_i32 : i32
      %15 = tpu.iota {dimensions = array<i32: 0>} : vector<8x128xi32>
      %c128_i32 = arith.constant 128 : i32
      %16 = vector.broadcast %c128_i32 : i32 to vector<8x128xi32>
      %17 = arith.muli %15, %16 : vector<8x128xi32>
      %18 = vector.broadcast %14 : i32 to vector<8x128xi32>
      %19 = arith.addi %18, %17 : vector<8x128xi32>
      %20 = tpu.iota {dimensions = array<i32: 1>} : vector<8x128xi32>
      %21 = arith.addi %19, %20 : vector<8x128xi32>
      %22 = vector.broadcast %13 : i32 to vector<8x128xi32>
      %23 = arith.cmpi slt, %21, %22 : vector<8x128xi32>
      %cst = arith.constant 0.000000e+00 : f32
      %24 = vector.broadcast %cst : f32 to vector<8x128xf32>
      %25 = arith.select %23, %11, %24 : vector<8x128xi1>, vector<8x128xf32>
      %cst_9 = arith.constant 0.000000e+00 : f32
      %26 = vector.broadcast %cst_9 : f32 to vector<8x128xf32>
      %27 = arith.select %23, %12, %26 : vector<8x128xi1>, vector<8x128xf32>
      %cst_10 = arith.constant 0x7F800000 : f32
      %28 = vector.broadcast %cst_10 : f32 to vector<8x128xf32>
      %29 = arith.select %23, %11, %28 : vector<8x128xi1>, vector<8x128xf32>
      %cst_11 = arith.constant 0x7F800000 : f32
      %30 = vector.broadcast %cst_11 : f32 to vector<8x128xf32>
      %31 = arith.select %23, %12, %30 : vector<8x128xi1>, vector<8x128xf32>
      %cst_12 = arith.constant 0xFF800000 : f32
      %32 = vector.broadcast %cst_12 : f32 to vector<8x128xf32>
      %33 = arith.select %23, %11, %32 : vector<8x128xi1>, vector<8x128xf32>
      %cst_13 = arith.constant 0xFF800000 : f32
      %34 = vector.broadcast %cst_13 : f32 to vector<8x128xf32>
      %35 = arith.select %23, %12, %34 : vector<8x128xi1>, vector<8x128xf32>
      %36 = arith.subf %25, %27 : vector<8x128xf32>
      %c0_14 = arith.constant 0 : index
      %c0_15 = arith.constant 0 : index
      %c0_16 = arith.constant 0 : index
      %c0_17 = arith.constant 0 : index
      %37 = vector.load %arg5[%c0_14, %c0_15, %c0_16, %c0_17] : memref<1x6x8x128xf32, #tpu.memory_space<vmem>>, vector<1x1x8x128xf32>
      %38 = vector.shape_cast %37 : vector<1x1x8x128xf32> to vector<8x128xf32>
      %39 = arith.mulf %36, %36 : vector<8x128xf32>
      %40 = vector.shape_cast %39 : vector<8x128xf32> to vector<1x8x128xf32>
      %cst_18 = arith.constant dense<0.000000e+00> : vector<8x128xf32>
      %41 = vector.multi_reduction <add>, %40, %cst_18 [0] : vector<1x8x128xf32> to vector<8x128xf32>
      %42 = arith.addf %38, %41 : vector<8x128xf32>
      %c0_19 = arith.constant 0 : index
      %c0_20 = arith.constant 0 : index
      %c0_21 = arith.constant 0 : index
      %c0_22 = arith.constant 0 : index
      %43 = vector.load %arg5[%c0_19, %c0_20, %c0_21, %c0_22] : memref<1x6x8x128xf32, #tpu.memory_space<vmem>>, vector<1x1x8x128xf32>
      %44 = vector.shape_cast %43 : vector<1x1x8x128xf32> to vector<8x128xf32>
      %45 = vector.shape_cast %42 : vector<8x128xf32> to vector<1x1x8x128xf32>
      tpu.vector_store %arg5[%c0_19, %c0_20, %c0_21, %c0_22], %45 {strides = array<i32>} : memref<1x6x8x128xf32, #tpu.memory_space<vmem>>, vector<1x1x8x128xf32>,
      %c0_23 = arith.constant 0 : index
      %c1 = arith.constant 1 : index
      %c0_24 = arith.constant 0 : index
      %c0_25 = arith.constant 0 : index
      %46 = vector.load %arg5[%c0_23, %c1, %c0_24, %c0_25] : memref<1x6x8x128xf32, #tpu.memory_space<vmem>>, vector<1x1x8x128xf32>
      %47 = vector.shape_cast %46 : vector<1x1x8x128xf32> to vector<8x128xf32>
      %48 = vector.shape_cast %25 : vector<8x128xf32> to vector<1x8x128xf32>
      %cst_26 = arith.constant dense<0.000000e+00> : vector<8x128xf32>
      %49 = vector.multi_reduction <add>, %48, %cst_26 [0] : vector<1x8x128xf32> to vector<8x128xf32>
      %50 = arith.addf %47, %49 : vector<8x128xf32>
      %c0_27 = arith.constant 0 : index
      %c1_28 = arith.constant 1 : index
      %c0_29 = arith.constant 0 : index
      %c0_30 = arith.constant 0 : index
      %51 = vector.load %arg5[%c0_27, %c1_28, %c0_29, %c0_30] : memref<1x6x8x128xf32, #tpu.memory_space<vmem>>, vector<1x1x8x128xf32>
      %52 = vector.shape_cast %51 : vector<1x1x8x128xf32> to vector<8x128xf32>
      %53 = vector.shape_cast %50 : vector<8x128xf32> to vector<1x1x8x128xf32>
      tpu.vector_store %arg5[%c0_27, %c1_28, %c0_29, %c0_30], %53 {strides = array<i32>} : memref<1x6x8x128xf32, #tpu.memory_space<vmem>>, vector<1x1x8x128xf32>,
      %c0_31 = arith.constant 0 : index
      %c2 = arith.constant 2 : index
      %c0_32 = arith.constant 0 : index
      %c0_33 = arith.constant 0 : index
      %54 = vector.load %arg5[%c0_31, %c2, %c0_32, %c0_33] : memref<1x6x8x128xf32, #tpu.memory_space<vmem>>, vector<1x1x8x128xf32>
      %55 = vector.shape_cast %54 : vector<1x1x8x128xf32> to vector<8x128xf32>
      %56 = vector.shape_cast %27 : vector<8x128xf32> to vector<1x8x128xf32>
      %cst_34 = arith.constant dense<0.000000e+00> : vector<8x128xf32>
      %57 = vector.multi_reduction <add>, %56, %cst_34 [0] : vector<1x8x128xf32> to vector<8x128xf32>
      %58 = arith.addf %55, %57 : vector<8x128xf32>
      %c0_35 = arith.constant 0 : index
      %c2_36 = arith.constant 2 : index
      %c0_37 = arith.constant 0 : index
      %c0_38 = arith.constant 0 : index
      %59 = vector.load %arg5[%c0_35, %c2_36, %c0_37, %c0_38] : memref<1x6x8x128xf32, #tpu.memory_space<vmem>>, vector<1x1x8x128xf32>
      %60 = vector.shape_cast %59 : vector<1x1x8x128xf32> to vector<8x128xf32>
      %61 = vector.shape_cast %58 : vector<8x128xf32> to vector<1x1x8x128xf32>
      tpu.vector_store %arg5[%c0_35, %c2_36, %c0_37, %c0_38], %61 {strides = array<i32>} : memref<1x6x8x128xf32, #tpu.memory_space<vmem>>, vector<1x1x8x128xf32>,
      %c0_39 = arith.constant 0 : index
      %c3 = arith.constant 3 : index
      %c0_40 = arith.constant 0 : index
      %c0_41 = arith.constant 0 : index
      %62 = vector.load %arg5[%c0_39, %c3, %c0_40, %c0_41] : memref<1x6x8x128xf32, #tpu.memory_space<vmem>>, vector<1x1x8x128xf32>
      %63 = vector.shape_cast %62 : vector<1x1x8x128xf32> to vector<8x128xf32>
      %64 = arith.mulf %25, %25 : vector<8x128xf32>
      %65 = vector.shape_cast %64 : vector<8x128xf32> to vector<1x8x128xf32>
      %cst_42 = arith.constant dense<0.000000e+00> : vector<8x128xf32>
      %66 = vector.multi_reduction <add>, %65, %cst_42 [0] : vector<1x8x128xf32> to vector<8x128xf32>
      %67 = arith.addf %63, %66 : vector<8x128xf32>
      %c0_43 = arith.constant 0 : index
      %c3_44 = arith.constant 3 : index
      %c0_45 = arith.constant 0 : index
      %c0_46 = arith.constant 0 : index
      %68 = vector.load %arg5[%c0_43, %c3_44, %c0_45, %c0_46] : memref<1x6x8x128xf32, #tpu.memory_space<vmem>>, vector<1x1x8x128xf32>
      %69 = vector.shape_cast %68 : vector<1x1x8x128xf32> to vector<8x128xf32>
      %70 = vector.shape_cast %67 : vector<8x128xf32> to vector<1x1x8x128xf32>
      tpu.vector_store %arg5[%c0_43, %c3_44, %c0_45, %c0_46], %70 {strides = array<i32>} : memref<1x6x8x128xf32, #tpu.memory_space<vmem>>, vector<1x1x8x128xf32>,
      %c0_47 = arith.constant 0 : index
      %c4 = arith.constant 4 : index
      %c0_48 = arith.constant 0 : index
      %c0_49 = arith.constant 0 : index
      %71 = vector.load %arg5[%c0_47, %c4, %c0_48, %c0_49] : memref<1x6x8x128xf32, #tpu.memory_space<vmem>>, vector<1x1x8x128xf32>
      %72 = vector.shape_cast %71 : vector<1x1x8x128xf32> to vector<8x128xf32>
      %73 = arith.mulf %27, %27 : vector<8x128xf32>
      %74 = vector.shape_cast %73 : vector<8x128xf32> to vector<1x8x128xf32>
      %cst_50 = arith.constant dense<0.000000e+00> : vector<8x128xf32>
      %75 = vector.multi_reduction <add>, %74, %cst_50 [0] : vector<1x8x128xf32> to vector<8x128xf32>
      %76 = arith.addf %72, %75 : vector<8x128xf32>
      %c0_51 = arith.constant 0 : index
      %c4_52 = arith.constant 4 : index
      %c0_53 = arith.constant 0 : index
      %c0_54 = arith.constant 0 : index
      %77 = vector.load %arg5[%c0_51, %c4_52, %c0_53, %c0_54] : memref<1x6x8x128xf32, #tpu.memory_space<vmem>>, vector<1x1x8x128xf32>
      %78 = vector.shape_cast %77 : vector<1x1x8x128xf32> to vector<8x128xf32>
      %79 = vector.shape_cast %76 : vector<8x128xf32> to vector<1x1x8x128xf32>
      tpu.vector_store %arg5[%c0_51, %c4_52, %c0_53, %c0_54], %79 {strides = array<i32>} : memref<1x6x8x128xf32, #tpu.memory_space<vmem>>, vector<1x1x8x128xf32>,
      %c0_55 = arith.constant 0 : index
      %c5 = arith.constant 5 : index
      %c0_56 = arith.constant 0 : index
      %c0_57 = arith.constant 0 : index
      %80 = vector.load %arg5[%c0_55, %c5, %c0_56, %c0_57] : memref<1x6x8x128xf32, #tpu.memory_space<vmem>>, vector<1x1x8x128xf32>
      %81 = vector.shape_cast %80 : vector<1x1x8x128xf32> to vector<8x128xf32>
      %82 = arith.mulf %25, %27 : vector<8x128xf32>
      %83 = vector.shape_cast %82 : vector<8x128xf32> to vector<1x8x128xf32>
      %cst_58 = arith.constant dense<0.000000e+00> : vector<8x128xf32>
      %84 = vector.multi_reduction <add>, %83, %cst_58 [0] : vector<1x8x128xf32> to vector<8x128xf32>
      %85 = arith.addf %81, %84 : vector<8x128xf32>
      %c0_59 = arith.constant 0 : index
      %c5_60 = arith.constant 5 : index
      %c0_61 = arith.constant 0 : index
      %c0_62 = arith.constant 0 : index
      %86 = vector.load %arg5[%c0_59, %c5_60, %c0_61, %c0_62] : memref<1x6x8x128xf32, #tpu.memory_space<vmem>>, vector<1x1x8x128xf32>
      %87 = vector.shape_cast %86 : vector<1x1x8x128xf32> to vector<8x128xf32>
      %88 = vector.shape_cast %85 : vector<8x128xf32> to vector<1x1x8x128xf32>
      tpu.vector_store %arg5[%c0_59, %c5_60, %c0_61, %c0_62], %88 {strides = array<i32>} : memref<1x6x8x128xf32, #tpu.memory_space<vmem>>, vector<1x1x8x128xf32>,
      %c0_63 = arith.constant 0 : index
      %c0_64 = arith.constant 0 : index
      %c0_65 = arith.constant 0 : index
      %c0_66 = arith.constant 0 : index
      %89 = vector.load %arg6[%c0_63, %c0_64, %c0_65, %c0_66] : memref<1x4x8x128xf32, #tpu.memory_space<vmem>>, vector<1x1x8x128xf32>
      %90 = vector.shape_cast %89 : vector<1x1x8x128xf32> to vector<8x128xf32>
      %91 = vector.shape_cast %29 : vector<8x128xf32> to vector<1x8x128xf32>
      %cst_67 = arith.constant dense<0x7F800000> : vector<8x128xf32>
      %92 = vector.multi_reduction <minimumf>, %91, %cst_67 [0] : vector<1x8x128xf32> to vector<8x128xf32>
      %93 = arith.minimumf %90, %92 : vector<8x128xf32>
      %c0_68 = arith.constant 0 : index
      %c0_69 = arith.constant 0 : index
      %c0_70 = arith.constant 0 : index
      %c0_71 = arith.constant 0 : index
      %94 = vector.load %arg6[%c0_68, %c0_69, %c0_70, %c0_71] : memref<1x4x8x128xf32, #tpu.memory_space<vmem>>, vector<1x1x8x128xf32>
      %95 = vector.shape_cast %94 : vector<1x1x8x128xf32> to vector<8x128xf32>
      %96 = vector.shape_cast %93 : vector<8x128xf32> to vector<1x1x8x128xf32>
      tpu.vector_store %arg6[%c0_68, %c0_69, %c0_70, %c0_71], %96 {strides = array<i32>} : memref<1x4x8x128xf32, #tpu.memory_space<vmem>>, vector<1x1x8x128xf32>,
      %c0_72 = arith.constant 0 : index
      %c1_73 = arith.constant 1 : index
      %c0_74 = arith.constant 0 : index
      %c0_75 = arith.constant 0 : index
      %97 = vector.load %arg6[%c0_72, %c1_73, %c0_74, %c0_75] : memref<1x4x8x128xf32, #tpu.memory_space<vmem>>, vector<1x1x8x128xf32>
      %98 = vector.shape_cast %97 : vector<1x1x8x128xf32> to vector<8x128xf32>
      %99 = vector.shape_cast %31 : vector<8x128xf32> to vector<1x8x128xf32>
      %cst_76 = arith.constant dense<0x7F800000> : vector<8x128xf32>
      %100 = vector.multi_reduction <minimumf>, %99, %cst_76 [0] : vector<1x8x128xf32> to vector<8x128xf32>
      %101 = arith.minimumf %98, %100 : vector<8x128xf32>
      %c0_77 = arith.constant 0 : index
      %c1_78 = arith.constant 1 : index
      %c0_79 = arith.constant 0 : index
      %c0_80 = arith.constant 0 : index
      %102 = vector.load %arg6[%c0_77, %c1_78, %c0_79, %c0_80] : memref<1x4x8x128xf32, #tpu.memory_space<vmem>>, vector<1x1x8x128xf32>
      %103 = vector.shape_cast %102 : vector<1x1x8x128xf32> to vector<8x128xf32>
      %104 = vector.shape_cast %101 : vector<8x128xf32> to vector<1x1x8x128xf32>
      tpu.vector_store %arg6[%c0_77, %c1_78, %c0_79, %c0_80], %104 {strides = array<i32>} : memref<1x4x8x128xf32, #tpu.memory_space<vmem>>, vector<1x1x8x128xf32>,
      %c0_81 = arith.constant 0 : index
      %c2_82 = arith.constant 2 : index
      %c0_83 = arith.constant 0 : index
      %c0_84 = arith.constant 0 : index
      %105 = vector.load %arg6[%c0_81, %c2_82, %c0_83, %c0_84] : memref<1x4x8x128xf32, #tpu.memory_space<vmem>>, vector<1x1x8x128xf32>
      %106 = vector.shape_cast %105 : vector<1x1x8x128xf32> to vector<8x128xf32>
      %107 = vector.shape_cast %33 : vector<8x128xf32> to vector<1x8x128xf32>
      %cst_85 = arith.constant dense<0xFF800000> : vector<8x128xf32>
      %108 = vector.multi_reduction <maximumf>, %107, %cst_85 [0] : vector<1x8x128xf32> to vector<8x128xf32>
      %109 = arith.maximumf %106, %108 : vector<8x128xf32>
      %c0_86 = arith.constant 0 : index
      %c2_87 = arith.constant 2 : index
      %c0_88 = arith.constant 0 : index
      %c0_89 = arith.constant 0 : index
      %110 = vector.load %arg6[%c0_86, %c2_87, %c0_88, %c0_89] : memref<1x4x8x128xf32, #tpu.memory_space<vmem>>, vector<1x1x8x128xf32>
      %111 = vector.shape_cast %110 : vector<1x1x8x128xf32> to vector<8x128xf32>
      %112 = vector.shape_cast %109 : vector<8x128xf32> to vector<1x1x8x128xf32>
      tpu.vector_store %arg6[%c0_86, %c2_87, %c0_88, %c0_89], %112 {strides = array<i32>} : memref<1x4x8x128xf32, #tpu.memory_space<vmem>>, vector<1x1x8x128xf32>,
      %c0_90 = arith.constant 0 : index
      %c3_91 = arith.constant 3 : index
      %c0_92 = arith.constant 0 : index
      %c0_93 = arith.constant 0 : index
      %113 = vector.load %arg6[%c0_90, %c3_91, %c0_92, %c0_93] : memref<1x4x8x128xf32, #tpu.memory_space<vmem>>, vector<1x1x8x128xf32>
      %114 = vector.shape_cast %113 : vector<1x1x8x128xf32> to vector<8x128xf32>
      %115 = vector.shape_cast %35 : vector<8x128xf32> to vector<1x8x128xf32>
      %cst_94 = arith.constant dense<0xFF800000> : vector<8x128xf32>
      %116 = vector.multi_reduction <maximumf>, %115, %cst_94 [0] : vector<1x8x128xf32> to vector<8x128xf32>
      %117 = arith.maximumf %114, %116 : vector<8x128xf32>
      %c0_95 = arith.constant 0 : index
      %c3_96 = arith.constant 3 : index
      %c0_97 = arith.constant 0 : index
      %c0_98 = arith.constant 0 : index
      %118 = vector.load %arg6[%c0_95, %c3_96, %c0_97, %c0_98] : memref<1x4x8x128xf32, #tpu.memory_space<vmem>>, vector<1x1x8x128xf32>
      %119 = vector.shape_cast %118 : vector<1x1x8x128xf32> to vector<8x128xf32>
      %120 = vector.shape_cast %117 : vector<8x128xf32> to vector<1x1x8x128xf32>
      tpu.vector_store %arg6[%c0_95, %c3_96, %c0_97, %c0_98], %120 {strides = array<i32>} : memref<1x4x8x128xf32, #tpu.memory_space<vmem>>, vector<1x1x8x128xf32>,
    } else {
    }
    return
  }
  func.func @transform_0(%arg0: i32, %arg1: i32, %arg2: memref<1xi32, #tpu.memory_space<smem>>) -> (i32, i32) {
    %c1_i32 = arith.constant 1 : i32
    %0 = arith.muli %arg0, %c1_i32 : i32
    %1 = arith.addi %0, %arg1 : i32
    %c0_i32 = arith.constant 0 : i32
    %2 = arith.minsi %1, %c0_i32 : i32
    %c0_i32_0 = arith.constant 0 : i32
    %c0_i32_1 = arith.constant 0 : i32
    return %2, %c0_i32_0 : i32, i32
  }
  func.func @transform_1(%arg0: i32, %arg1: i32, %arg2: memref<1xi32, #tpu.memory_space<smem>>) -> (i32, i32) {
    %c1_i32 = arith.constant 1 : i32
    %0 = arith.muli %arg0, %c1_i32 : i32
    %1 = arith.addi %0, %arg1 : i32
    %c0_i32 = arith.constant 0 : i32
    %2 = arith.minsi %1, %c0_i32 : i32
    %c0_i32_0 = arith.constant 0 : i32
    %c0_i32_1 = arith.constant 0 : i32
    return %2, %c0_i32_0 : i32, i32
  }
  func.func @transform_2(%arg0: i32, %arg1: i32, %arg2: memref<1xi32, #tpu.memory_space<smem>>) -> (i32, i32, i32, i32) {
    %c0_i32 = arith.constant 0 : i32
    %c0_i32_0 = arith.constant 0 : i32
    %c0_i32_1 = arith.constant 0 : i32
    %c0_i32_2 = arith.constant 0 : i32
    return %arg0, %c0_i32, %c0_i32_0, %c0_i32_1 : i32, i32, i32, i32
  }
  func.func @transform_3(%arg0: i32, %arg1: i32, %arg2: memref<1xi32, #tpu.memory_space<smem>>) -> (i32, i32, i32, i32) {
    %c0_i32 = arith.constant 0 : i32
    %c0_i32_0 = arith.constant 0 : i32
    %c0_i32_1 = arith.constant 0 : i32
    %c0_i32_2 = arith.constant 0 : i32
    return %arg0, %c0_i32, %c0_i32_0, %c0_i32_1 : i32, i32, i32, i32
  }
}

</mosaic_0001>

<llo_original>
// kernel: tpu_custom_call.1
$region0: #{tpu_custom_call.1}
  #allocation0 [shape = 'u32[]', space=smem, size = 0x4, offset = 0x4, fixed_abs, tag = 'smem constant byte address 0x4 - core index']
  #allocation1 [shape = 'u32[144,128]{1,0:T(1,128)}', space=vmem, size = 0x12000, scoped, tag = 'internal scratch']
  #allocation2 [shape = 's32[1]{0}', space=sflag, size = 0x4, scoped, tag = 'scoped memory for tpu_custom_call.1']
  #allocation3 [shape = 's32[1]{0:T(128)S(6)}', space=smem, size = 0x200, scoped, tag = 'prefetched SMEM operand 0']
  %s0 = inlined_call_operand.<no memory space> [shape: s32[1], index: 0, kind: input, shape index: {}]
  %s1 = inlined_call_operand.hbm [shape: f32[8,128], index: 1, kind: input, shape index: {}]
  %s2 = inlined_call_operand.hbm [shape: f32[8,128], index: 2, kind: input, shape index: {}]
  %s3 = inlined_call_operand.hbm [shape: f32[2,6,8,128], index: 3, kind: output, shape index: {0}]
  %s4 = inlined_call_operand.hbm [shape: f32[2,4,8,128], index: 4, kind: output, shape index: {1}]
  %5 = xla_tuple %s3, %s4
  %s6 = sld [smem:[#allocation0]]
  $region69: #{tpu_custom_call.1} parent=0
    _
  %s8 = ssub.s32 1, %s6
  %s9 = scalar_select 0, %s8, %s6
  %10 = sst [smem:[#allocation3]] %s0
  $region1: #{tpu_custom_call.1} parent=0
    #allocation4 [shape = 'u8[8192]{0}', space=vmem, size = 0x2000, scoped, tag = 'input window, operand 1']
    #allocation5 [shape = 's32[2]{0}', space=sflag, size = 0x8, scoped, tag = 'scoped memory for tpu_custom_call.1']
    #allocation6 [shape = 's32[2]{0}', space=sflag, size = 0x8, scoped, tag = 'scoped memory for tpu_custom_call.1']
    #allocation7 [shape = 'u8[8192]{0}', space=vmem, size = 0x2000, scoped, tag = 'input window, operand 2']
    #allocation8 [shape = 's32[2]{0}', space=sflag, size = 0x8, scoped, tag = 'scoped memory for tpu_custom_call.1']
    #allocation9 [shape = 'u8[49152]{0}', space=vmem, size = 0xc000, scoped, tag = 'output window, operand 0']
    #allocation10 [shape = 'u8[32768]{0}', space=vmem, size = 0x8000, scoped, tag = 'output window, operand 1']
    #allocation11 [shape = 's32[2]{0}', space=sflag, size = 0x8, scoped, tag = 'scoped memory for tpu_custom_call.1']
    %11 = vsyncpa [#allocation5], 0
    %s12 = scalar_lea.sflag [#allocation5], 1
    %13 = vsyncpa %s12, 0
    %14 = vsyncpa [#allocation8], 0
    %s15 = scalar_lea.sflag [#allocation8], 1
    %16 = vsyncpa %s15, 0
    %17 = vsyncpa [#allocation6], 0
    %s18 = scalar_lea.sflag [#allocation6], 1
    %19 = vsyncpa %s18, 0
    %20 = vsyncpa [#allocation11], 0
    %s21 = scalar_lea.sflag [#allocation11], 1
    %22 = vsyncpa %s21, 0
    loop: start=0, step=1, limit=4
    $region2: #{tpu_custom_call.1} parent=1 // loop_pre_header
      _
    $region3: #{tpu_custom_call.1} parent=1 // loop_header
      %s24 = sphi 0, %s28
      %p25 = scmp.ge.s32.totalorder %s24, 4
      %s31 = sphi 0, %s43
      %s32 = sphi 0, %s39
      %s33 = sphi 0, %s31
      %s34 = sphi 0, %s32
      %s35 = sphi 0, %s33
      %s36 = sphi 0, %s34
      %s52 = sphi 0, %s54
      %s55 = sphi 0, %s52
      %s56 = sphi 0, %s55
      %s72 = sphi 0, %s56
      %s84 = sphi 0, %s86
      %s87 = sphi 0, %s84
      %s88 = sphi 0, %s87
      %s104 = sphi 0, %s88
      %s110 = sphi 0, %s112
      %s113 = sphi 0, %s110
      %s114 = sphi 0, %s113
      %s130 = sphi 0, %s114
      %s136 = sphi 0, %s138
      %s139 = sphi 0, %s136
      %s140 = sphi 0, %s139
      %s156 = sphi 0, %s140
    $region4: #{tpu_custom_call.1} parent=1 // loop_header_branch
      %27 = sbr.rel (%p25) target = $region8
    $region5: #{tpu_custom_call.1} parent=1 // loop_body
      %s29 = ssub.s32 %s24, 1
      %s30 = ssub.s32 %s24, 2
      %s37 = sadd.s32 1, %s32
      %p38 = scmp.ge.s32.totalorder %s37, 1
      %s39 = scalar_select %p38, 0, %s37
      %s40 = sadd.s32 1, %s31
      %s41 = scalar_select %p38, %s40, %s31
      %p42 = scmp.ge.s32.totalorder %s41, 2
      %s43 = scalar_select %p42, 0, %s41
      %s44 = sadd.s32 %s31, %s32
      %p45 = scmp.lt.s32.totalorder %s44, 0
      %s46 = scalar_select %p45, %s44, 0
      %s47 = sadd.s32 %s43, %s39
      %p48 = scmp.lt.s32.totalorder %s47, 0
      %s49 = scalar_select %p48, %s47, 0
      %s50 = ssub.s32 %s46, %s49
      %p51 = scmp.eq.s32.totalorder %s50, 0
      %s53 = sadd.s32 %s52, 1
      %s54 = scalar_select %p51, %s52, %s53
      %p57 = pneg %p51
      %p58 = scmp.eq.s32.totalorder %s24, 1
      %p59 = por %p57, %p58
      %p60 = scmp.ne.s32.totalorder %s52, %s55
      %p61 = scmp.eq.s32.totalorder %s24, 0
      %p62 = por %p60, %p61
      %p63 = scmp.ne.s32.totalorder %s52, %s55
      %p64 = scmp.eq.s32.totalorder %s29, 1
      %p65 = por %p63, %p64
      %p66 = scmp.ne.s32.totalorder %s55, %s56
      %p67 = scmp.eq.s32.totalorder %s29, 0
      %p68 = por %p66, %p67
      %p69 = scmp.ne.s32.totalorder %s55, %s56
      %p70 = scmp.eq.s32.totalorder %s30, 1
      %p71 = por %p69, %p70
      %p73 = scmp.ne.s32.totalorder %s56, %s72
      %p74 = scmp.eq.s32.totalorder %s30, 0
      %p75 = por %p73, %p74
      %s76 = sadd.s32 %s31, %s32
      %p77 = scmp.lt.s32.totalorder %s76, 0
      %s78 = scalar_select %p77, %s76, 0
      %s79 = sadd.s32 %s43, %s39
      %p80 = scmp.lt.s32.totalorder %s79, 0
      %s81 = scalar_select %p80, %s79, 0
      %s82 = ssub.s32 %s78, %s81
      %p83 = scmp.eq.s32.totalorder %s82, 0
      %s85 = sadd.s32 %s84, 1
      %s86 = scalar_select %p83, %s84, %s85
      %p89 = pneg %p83
      %p90 = scmp.eq.s32.totalorder %s24, 1
      %p91 = por %p89, %p90
      %p92 = scmp.ne.s32.totalorder %s84, %s87
      %p93 = scmp.eq.s32.totalorder %s24, 0
      %p94 = por %p92, %p93
      %p95 = scmp.ne.s32.totalorder %s84, %s87
      %p96 = scmp.eq.s32.totalorder %s29, 1
      %p97 = por %p95, %p96
      %p98 = scmp.ne.s32.totalorder %s87, %s88
      %p99 = scmp.eq.s32.totalorder %s29, 0
      %p100 = por %p98, %p99
      %p101 = scmp.ne.s32.totalorder %s87, %s88
      %p102 = scmp.eq.s32.totalorder %s30, 1
      %p103 = por %p101, %p102
      %p105 = scmp.ne.s32.totalorder %s88, %s104
      %p106 = scmp.eq.s32.totalorder %s30, 0
      %p107 = por %p105, %p106
      %s108 = ssub.s32 %s31, %s43
      %p109 = scmp.eq.s32.totalorder %s108, 0
      %s111 = sadd.s32 %s110, 1
      %s112 = scalar_select %p109, %s110, %s111
      %p115 = pneg %p109
      %p116 = scmp.eq.s32.totalorder %s24, 1
      %p117 = por %p115, %p116
      %p118 = scmp.ne.s32.totalorder %s110, %s113
      %p119 = scmp.eq.s32.totalorder %s24, 0
      %p120 = por %p118, %p119
      %p121 = scmp.ne.s32.totalorder %s110, %s113
      %p122 = scmp.eq.s32.totalorder %s29, 1
      %p123 = por %p121, %p122
      %p124 = scmp.ne.s32.totalorder %s113, %s114
      %p125 = scmp.eq.s32.totalorder %s29, 0
      %p126 = por %p124, %p125
      %p127 = scmp.ne.s32.totalorder %s113, %s114
      %p128 = scmp.eq.s32.totalorder %s30, 1
      %p129 = por %p127, %p128
      %p131 = scmp.ne.s32.totalorder %s114, %s130
      %p132 = scmp.eq.s32.totalorder %s30, 0
      %p133 = por %p131, %p132
      %s134 = ssub.s32 %s31, %s43
      %p135 = scmp.eq.s32.totalorder %s134, 0
      %s137 = sadd.s32 %s136, 1
      %s138 = scalar_select %p135, %s136, %s137
      %p141 = pneg %p135
      %p142 = scmp.eq.s32.totalorder %s24, 1
      %p143 = por %p141, %p142
      %p144 = scmp.ne.s32.totalorder %s136, %s139
      %p145 = scmp.eq.s32.totalorder %s24, 0
      %p146 = por %p144, %p145
      %p147 = scmp.ne.s32.totalorder %s136, %s139
      %p148 = scmp.eq.s32.totalorder %s29, 1
      %p149 = por %p147, %p148
      %p150 = scmp.ne.s32.totalorder %s139, %s140
      %p151 = scmp.eq.s32.totalorder %s29, 0
      %p152 = por %p150, %p151
      %p153 = scmp.ne.s32.totalorder %s139, %s140
      %p154 = scmp.eq.s32.totalorder %s30, 1
      %p155 = por %p153, %p154
      %p157 = scmp.ne.s32.totalorder %s140, %s156
      %p158 = scmp.eq.s32.totalorder %s30, 0
      %p159 = por %p157, %p158
      %p160 = scmp.le.s32.totalorder 1, %s24
      %p161 = scmp.lt.s32.totalorder %s24, 3
      %p162 = pnand %p160, %p161
      %p163 = pneg %p162
      // Predicated region
      $region9: #{tpu_custom_call.1} parent=5 // pred_check
        _
      $region10: #{tpu_custom_call.1} parent=5 // pred_check_branch
        %165 = sbr.rel (%p162) target = $region12
      $region11: #{tpu_custom_call.1} parent=5 // pred_region
        %s166 = ssub.s32 %s24, 1
      $region12: #{tpu_custom_call.1} parent=5 // pred_fallthru
        _
      %p167 = scmp.lt.s32.totalorder %s24, 2
      // Predicated region
      $region13: #{tpu_custom_call.1} parent=5 // pred_check
        %p168 = pneg %p167
      $region14: #{tpu_custom_call.1} parent=5 // pred_check_branch
        %170 = sbr.rel (%p168) target = $region16
      $region15: #{tpu_custom_call.1} parent=5 // pred_region
        // Predicated region
        $region17: #{tpu_custom_call.1} parent=15 // pred_check
          %p171 = pneg %p62
        $region18: #{tpu_custom_call.1} parent=15 // pred_check_branch
          %173 = sbr.rel (%p171) target = $region20
        $region19: #{tpu_custom_call.1} parent=15 // pred_region
          %s174 = sand.u32 %s52, 1
          %s175 = scalar_lea.sflag [#allocation5], %s174
          %s176 = sand.u32 %s52, 1
          %s177 = smul.addr %s176, 8
          %s178 = scalar_lea.vmem [#allocation4], %s177
          %s179 = sadd.s32 %s31, %s32
          %p180 = scmp.lt.s32.totalorder %s179, 0
          %s181 = scalar_select %p180, %s179, 0
          %s183 = ssub.s32 128, 128
          %184 = vsyncadd %s175, %s183
          %s185 = smul.addr %s181, 128
          %s186 = scalar_lea.hbm %s1, %s185
          %s188 = sshll.u32 %s178, 4
          %s189 = int_to_ptr.vmem [resolvable:$true] %s188
          %191 = dma.hbm_to_vmem [thread:$0]  %s186, 128, %s189, %s175
        $region20: #{tpu_custom_call.1} parent=15 // pred_fallthru
          _
        // Predicated region
        $region21: #{tpu_custom_call.1} parent=15 // pred_check
          %p192 = pneg %p94
        $region22: #{tpu_custom_call.1} parent=15 // pred_check_branch
          %194 = sbr.rel (%p192) target = $region24
        $region23: #{tpu_custom_call.1} parent=15 // pred_region
          %s195 = sand.u32 %s84, 1
          %s196 = scalar_lea.sflag [#allocation8], %s195
          %s197 = sand.u32 %s84, 1
          %s198 = smul.addr %s197, 8
          %s199 = scalar_lea.vmem [#allocation7], %s198
          %s200 = sadd.s32 %s31, %s32
          %p201 = scmp.lt.s32.totalorder %s200, 0
          %s202 = scalar_select %p201, %s200, 0
          %s204 = ssub.s32 128, 128
          %205 = vsyncadd %s196, %s204
          %s206 = smul.addr %s202, 128
          %s207 = scalar_lea.hbm %s2, %s206
          %s209 = sshll.u32 %s199, 4
          %s210 = int_to_ptr.vmem [resolvable:$true] %s209
          %212 = dma.hbm_to_vmem [thread:$0]  %s207, 128, %s210, %s196
        $region24: #{tpu_custom_call.1} parent=15 // pred_fallthru
          _
      $region16: #{tpu_custom_call.1} parent=5 // pred_fallthru
        _
      %p213 = scmp.le.s32.totalorder 1, %s24
      %p214 = scmp.lt.s32.totalorder %s24, 3
      %p215 = pnand %p213, %p214
      %p216 = pneg %p215
      // Predicated region
      $region25: #{tpu_custom_call.1} parent=5 // pred_check
        _
      $region26: #{tpu_custom_call.1} parent=5 // pred_check_branch
        %218 = sbr.rel (%p215) target = $region28
      $region27: #{tpu_custom_call.1} parent=5 // pred_region
        %s219 = ssub.s32 %s24, 1
        %s220 = sand.u32 %s55, 1
        %s221 = scalar_lea.sflag [#allocation5], %s220
        %s222 = sand.u32 %s55, 1
        %s223 = smul.addr %s222, 8
        %s224 = scalar_lea.vmem [#allocation4], %s223
        // Predicated region
        $region29: #{tpu_custom_call.1} parent=27 // pred_check
          %p225 = pneg %p68
        $region30: #{tpu_custom_call.1} parent=27 // pred_check_branch
          %227 = sbr.rel (%p225) target = $region32
        $region31: #{tpu_custom_call.1} parent=27 // pred_region
          %228 = dma.done %s221, 128
        $region32: #{tpu_custom_call.1} parent=27 // pred_fallthru
          _
        %s229 = sand.u32 %s87, 1
        %s230 = scalar_lea.sflag [#allocation8], %s229
        %s231 = sand.u32 %s87, 1
        %s232 = smul.addr %s231, 8
        %s233 = scalar_lea.vmem [#allocation7], %s232
        // Predicated region
        $region33: #{tpu_custom_call.1} parent=27 // pred_check
          %p234 = pneg %p100
        $region34: #{tpu_custom_call.1} parent=27 // pred_check_branch
          %236 = sbr.rel (%p234) target = $region36
        $region35: #{tpu_custom_call.1} parent=27 // pred_region
          %237 = dma.done %s230, 128
        $region36: #{tpu_custom_call.1} parent=27 // pred_fallthru
          _
        %s238 = sand.u32 %s55, 1
        %s239 = scalar_lea.sflag [#allocation5], %s238
        %s240 = sand.u32 %s55, 1
        %s241 = smul.addr %s240, 8
        %s242 = scalar_lea.vmem [#allocation4], %s241
        %p243 = pneg %p68
        %p244 = pneg %p65
        %s245 = sand.u32 %s87, 1
        %s246 = scalar_lea.sflag [#allocation8], %s245
        %s247 = sand.u32 %s87, 1
        %s248 = smul.addr %s247, 8
        %s249 = scalar_lea.vmem [#allocation7], %s248
        %p250 = pneg %p100
        %p251 = pneg %p97
        %p252 = pneg %p126
        %p253 = pneg %p123
        %s254 = sand.u32 %s113, 1
        %s255 = scalar_lea.sflag [#allocation6], %s254
        %s256 = sand.u32 %s113, 1
        %s257 = smul.addr %s256, 48
        %s258 = scalar_lea.vmem [#allocation9], %s257
        %p259 = pneg %p152
        %p260 = pneg %p149
        %s261 = sand.u32 %s139, 1
        %s262 = scalar_lea.sflag [#allocation11], %s261
        %s263 = sand.u32 %s139, 1
        %s264 = smul.addr %s263, 32
        %s265 = scalar_lea.vmem [#allocation10], %s264
        %s266 = sadd.s32 %s33, %s34
        %p267 = scmp.lt.s32.totalorder %s266, 0
        %s268 = scalar_select %p267, %s266, 0
        %s269 = sadd.s32 %s33, %s34
        %p270 = scmp.lt.s32.totalorder %s269, 0
        %s271 = scalar_select %p270, %s269, 0
        %s272 = sadd.s32 %s33, %s34
        %p273 = scmp.eq.s32.totalorder %s34, 0
        // Predicated region
        $region37: #{tpu_custom_call.1} parent=27 // pred_check
          %p274 = pneg %p273
        $region38: #{tpu_custom_call.1} parent=27 // pred_check_branch
          %276 = sbr.rel (%p274) target = $region40
        $region39: #{tpu_custom_call.1} parent=27 // pred_region
          %277 = vst [vmem:[%s258] sm:$0xff] 0.0
          %278 = vst [vmem:[%s258 + $0x8] sm:$0xff] 0.0
          %279 = vst [vmem:[%s258 + $0x10] sm:$0xff] 0.0
          %280 = vst [vmem:[%s258 + $0x18] sm:$0xff] 0.0
          %281 = vst [vmem:[%s258 + $0x20] sm:$0xff] 0.0
          %282 = vst [vmem:[%s258 + $0x28] sm:$0xff] 0.0
          %283 = vst [vmem:[%s265] sm:$0xff] inf
          %s284 = scalar_lea.vmem %s265, 8 [#allocation10]
          %285 = vst [vmem:[%s284] sm:$0xff] inf
          %s286 = scalar_lea.vmem %s265, 16 [#allocation10]
          %287 = vst [vmem:[%s286] sm:$0xff] -inf
          %s288 = scalar_lea.vmem %s265, 24 [#allocation10]
          %289 = vst [vmem:[%s288] sm:$0xff] -inf
        $region40: #{tpu_custom_call.1} parent=27 // pred_fallthru
          _
        %p290 = scmp.lt.s32.totalorder %s272, 0
        // Predicated region
        $region41: #{tpu_custom_call.1} parent=27 // pred_check
          %p291 = pneg %p290
        $region42: #{tpu_custom_call.1} parent=27 // pred_check_branch
          %293 = sbr.rel (%p291) target = $region44
        $region43: #{tpu_custom_call.1} parent=27 // pred_region
          %v294 = vld [vmem:[%s224] sm:$0xff]
          %v295 = vld [vmem:[%s233] sm:$0xff]
          %v296 = vsub.f32 %v294, %v295
          %v297 = vld [vmem:[%s258] sm:$0xff]
          %v298 = vmul.f32 %v296, %v296
          %v299 = vadd.f32 %v298, 0.0
          %v300 = vadd.f32 %v297, %v299
          %301 = vst [vmem:[%s258] sm:$0xff] %v300
          %s302 = scalar_lea.vmem %s258, 8 [#allocation9]
          %v303 = vld [vmem:[%s302] sm:$0xff]
          %v304 = vadd.f32 %v294, 0.0
          %v305 = vadd.f32 %v303, %v304
          %306 = vst [vmem:[%s302] sm:$0xff] %v305
          %s307 = scalar_lea.vmem %s258, 16 [#allocation9]
          %v308 = vld [vmem:[%s307] sm:$0xff]
          %v309 = vadd.f32 %v295, 0.0
          %v310 = vadd.f32 %v308, %v309
          %311 = vst [vmem:[%s307] sm:$0xff] %v310
          %s312 = scalar_lea.vmem %s258, 24 [#allocation9]
          %v313 = vld [vmem:[%s312] sm:$0xff]
          %v314 = vmul.f32 %v294, %v294
          %v315 = vadd.f32 %v314, 0.0
          %v316 = vadd.f32 %v313, %v315
          %317 = vst [vmem:[%s312] sm:$0xff] %v316
          %s318 = scalar_lea.vmem %s258, 32 [#allocation9]
          %v319 = vld [vmem:[%s318] sm:$0xff]
          %v320 = vmul.f32 %v295, %v295
          %v321 = vadd.f32 %v320, 0.0
          %v322 = vadd.f32 %v319, %v321
          %323 = vst [vmem:[%s318] sm:$0xff] %v322
          %s324 = scalar_lea.vmem %s258, 40 [#allocation9]
          %v325 = vld [vmem:[%s324] sm:$0xff]
          %v326 = vmul.f32 %v294, %v295
          %v327 = vadd.f32 %v326, 0.0
          %v328 = vadd.f32 %v325, %v327
          %329 = vst [vmem:[%s324] sm:$0xff] %v328
          %v330 = vld [vmem:[%s265] sm:$0xff]
          %v331 = vmin.f32 %v330, %v294
          %332 = vst [vmem:[%s265] sm:$0xff] %v331
          %s333 = scalar_lea.vmem %s265, 8 [#allocation10]
          %v334 = vld [vmem:[%s333] sm:$0xff]
          %v335 = vmin.f32 %v334, %v295
          %336 = vst [vmem:[%s333] sm:$0xff] %v335
          %s337 = scalar_lea.vmem %s265, 16 [#allocation10]
          %v338 = vld [vmem:[%s337] sm:$0xff]
          %v339 = vmax.f32 %v338, %v294
          %340 = vst [vmem:[%s337] sm:$0xff] %v339
          %s341 = scalar_lea.vmem %s265, 24 [#allocation10]
          %v342 = vld [vmem:[%s341] sm:$0xff]
          %v343 = vmax.f32 %v342, %v295
          %344 = vst [vmem:[%s341] sm:$0xff] %v343
        $region44: #{tpu_custom_call.1} parent=27 // pred_fallthru
          _
        %p345 = scmp.eq.s32.totalorder %s272, 0
        // Predicated region
        $region45: #{tpu_custom_call.1} parent=27 // pred_check
          %p346 = pneg %p345
        $region46: #{tpu_custom_call.1} parent=27 // pred_check_branch
          %348 = sbr.rel (%p346) target = $region48
        $region47: #{tpu_custom_call.1} parent=27 // pred_region
          %v349 = vld [vmem:[%s224] sm:$0xff]
          %v350 = vld [vmem:[%s233] sm:$0xff]
          %s351 = sld [smem:[#allocation3]]
          %s352 = smul.u32 %s272, 1024
          %v353 = vlaneseq
          %v354 = vshrl.u32 %v353, 7
          %v355 = vmul.u32 %v354, 128
          %v356 = vstv %s352
          %v357 = vadd.s32 %v356, %v355
          %v358 = vlaneseq
          %v359 = vand.u32 %v358, 127
          %v360 = vadd.s32 %v357, %v359
          %v361 = vstv %s351
          %vm362 = vcmp.lt.s32.totalorder %v360, %v361
          %v363 = vsel %vm362, %v349, 0.0
          %v364 = vsel %vm362, %v350, 0.0
          %v365 = vsel %vm362, %v349, inf
          %v366 = vsel %vm362, %v350, inf
          %v367 = vsel %vm362, %v349, -inf
          %v368 = vsel %vm362, %v350, -inf
          %v369 = vsub.f32 %v363, %v364
          %v370 = vld [vmem:[%s258] sm:$0xff]
          %v371 = vmul.f32 %v369, %v369
          %v372 = vadd.f32 %v371, 0.0
          %v373 = vadd.f32 %v370, %v372
          %374 = vst [vmem:[%s258] sm:$0xff] %v373
          %s375 = scalar_lea.vmem %s258, 8 [#allocation9]
          %v376 = vld [vmem:[%s375] sm:$0xff]
          %v377 = vadd.f32 %v363, 0.0
          %v378 = vadd.f32 %v376, %v377
          %379 = vst [vmem:[%s375] sm:$0xff] %v378
          %s380 = scalar_lea.vmem %s258, 16 [#allocation9]
          %v381 = vld [vmem:[%s380] sm:$0xff]
          %v382 = vadd.f32 %v364, 0.0
          %v383 = vadd.f32 %v381, %v382
          %384 = vst [vmem:[%s380] sm:$0xff] %v383
          %s385 = scalar_lea.vmem %s258, 24 [#allocation9]
          %v386 = vld [vmem:[%s385] sm:$0xff]
          %v387 = vmul.f32 %v363, %v363
          %v388 = vadd.f32 %v387, 0.0
          %v389 = vadd.f32 %v386, %v388
          %390 = vst [vmem:[%s385] sm:$0xff] %v389
          %s391 = scalar_lea.vmem %s258, 32 [#allocation9]
          %v392 = vld [vmem:[%s391] sm:$0xff]
          %v393 = vmul.f32 %v364, %v364
          %v394 = vadd.f32 %v393, 0.0
          %v395 = vadd.f32 %v392, %v394
          %396 = vst [vmem:[%s391] sm:$0xff] %v395
          %s397 = scalar_lea.vmem %s258, 40 [#allocation9]
          %v398 = vld [vmem:[%s397] sm:$0xff]
          %v399 = vmul.f32 %v363, %v364
          %v400 = vadd.f32 %v399, 0.0
          %v401 = vadd.f32 %v398, %v400
          %402 = vst [vmem:[%s397] sm:$0xff] %v401
          %v403 = vld [vmem:[%s265] sm:$0xff]
          %v404 = vmin.f32 %v403, %v365
          %405 = vst [vmem:[%s265] sm:$0xff] %v404
          %s406 = scalar_lea.vmem %s265, 8 [#allocation10]
          %v407 = vld [vmem:[%s406] sm:$0xff]
          %v408 = vmin.f32 %v407, %v366
          %409 = vst [vmem:[%s406] sm:$0xff] %v408
          %s410 = scalar_lea.vmem %s265, 16 [#allocation10]
          %v411 = vld [vmem:[%s410] sm:$0xff]
          %v412 = vmax.f32 %v411, %v367
          %413 = vst [vmem:[%s410] sm:$0xff] %v412
          %s414 = scalar_lea.vmem %s265, 24 [#allocation10]
          %v415 = vld [vmem:[%s414] sm:$0xff]
          %v416 = vmax.f32 %v415, %v368
          %417 = vst [vmem:[%s414] sm:$0xff] %v416
        $region48: #{tpu_custom_call.1} parent=27 // pred_fallthru
          _
        %s418 = sand.u32 %s113, 1
        %s419 = scalar_lea.sflag [#allocation6], %s418
        %s420 = sand.u32 %s113, 1
        %s421 = smul.addr %s420, 48
        %s422 = scalar_lea.vmem [#allocation9], %s421
        %s423 = sand.u32 %s139, 1
        %s424 = scalar_lea.sflag [#allocation11], %s423
        %s425 = sand.u32 %s139, 1
        %s426 = smul.addr %s425, 32
        %s427 = scalar_lea.vmem [#allocation10], %s426
        // Predicated region
        $region49: #{tpu_custom_call.1} parent=27 // pred_check
          %p428 = pneg %p123
        $region50: #{tpu_custom_call.1} parent=27 // pred_check_branch
          %430 = sbr.rel (%p428) target = $region52
        $region51: #{tpu_custom_call.1} parent=27 // pred_region
          %s432 = ssub.s32 768, 768
          %433 = vsyncadd %s419, %s432
          %s434 = smul.addr %s33, 6
          %s435 = smul.addr %s434, 128
          %s436 = scalar_lea.hbm %s3, %s435
          %s437 = sshll.u32 %s422, 4
          %s438 = int_to_ptr.vmem [resolvable:$true] %s437
          %443 = dma.vmem_to_hbm [thread:$0]  %s438, 768, %s436, %s419, 128, 128, 8
        $region52: #{tpu_custom_call.1} parent=27 // pred_fallthru
          _
        // Predicated region
        $region53: #{tpu_custom_call.1} parent=27 // pred_check
          %p444 = pneg %p149
        $region54: #{tpu_custom_call.1} parent=27 // pred_check_branch
          %446 = sbr.rel (%p444) target = $region56
        $region55: #{tpu_custom_call.1} parent=27 // pred_region
          %s448 = ssub.s32 512, 512
          %449 = vsyncadd %s424, %s448
          %s450 = smul.addr %s33, 4
          %s451 = smul.addr %s450, 128
          %s452 = scalar_lea.hbm %s4, %s451
          %s453 = sshll.u32 %s427, 4
          %s454 = int_to_ptr.vmem [resolvable:$true] %s453
          %459 = dma.vmem_to_hbm [thread:$0]  %s454, 512, %s452, %s424, 128, 128, 8
        $region56: #{tpu_custom_call.1} parent=27 // pred_fallthru
          _
      $region28: #{tpu_custom_call.1} parent=5 // pred_fallthru
        _
      %p460 = scmp.le.s32.totalorder 2, %s24
      // Predicated region
      $region57: #{tpu_custom_call.1} parent=5 // pred_check
        %p461 = pneg %p460
      $region58: #{tpu_custom_call.1} parent=5 // pred_check_branch
        %463 = sbr.rel (%p461) target = $region60
      $region59: #{tpu_custom_call.1} parent=5 // pred_region
        %s464 = ssub.s32 %s24, 2
        // Predicated region
        $region61: #{tpu_custom_call.1} parent=59 // pred_check
          %p465 = pneg %p129
        $region62: #{tpu_custom_call.1} parent=59 // pred_check_branch
          %467 = sbr.rel (%p465) target = $region64
        $region63: #{tpu_custom_call.1} parent=59 // pred_region
          %s468 = sand.u32 %s114, 1
          %s469 = scalar_lea.sflag [#allocation6], %s468
          %s470 = sand.u32 %s114, 1
          %s471 = smul.addr %s470, 48
          %s472 = scalar_lea.vmem [#allocation9], %s471
          %473 = dma.done %s469, 768
        $region64: #{tpu_custom_call.1} parent=59 // pred_fallthru
          _
        // Predicated region
        $region65: #{tpu_custom_call.1} parent=59 // pred_check
          %p474 = pneg %p155
        $region66: #{tpu_custom_call.1} parent=59 // pred_check_branch
          %476 = sbr.rel (%p474) target = $region68
        $region67: #{tpu_custom_call.1} parent=59 // pred_region
          %s477 = sand.u32 %s140, 1
          %s478 = scalar_lea.sflag [#allocation11], %s477
          %s479 = sand.u32 %s140, 1
          %s480 = smul.addr %s479, 32
          %s481 = scalar_lea.vmem [#allocation10], %s480
          %482 = dma.done %s478, 512
        $region68: #{tpu_custom_call.1} parent=59 // pred_fallthru
          _
      $region60: #{tpu_custom_call.1} parent=5 // pred_fallthru
        _
    $region6: #{tpu_custom_call.1} parent=1 // loop_footer
      %s28 = sadd.s32 1, %s24
    $region7: #{tpu_custom_call.1} parent=1 // loop_footer_branch
      %23 = sbr.rel target = $region3
    $region8: #{tpu_custom_call.1} parent=1 // loop_exit
      _
    %483 = vsyncpa [#allocation5], 1
    %s484 = scalar_lea.sflag [#allocation5], 1
    %485 = vsyncpa %s484, 1
    %486 = vsyncpa [#allocation8], 1
    %s487 = scalar_lea.sflag [#allocation8], 1
    %488 = vsyncpa %s487, 1
    %489 = vsyncpa [#allocation6], 1
    %s490 = scalar_lea.sflag [#allocation6], 1
    %491 = vsyncpa %s490, 1
    %492 = vsyncpa [#allocation11], 1
    %s493 = scalar_lea.sflag [#allocation11], 1
    %494 = vsyncpa %s493, 1

</llo_original>
